<compile_context>
chip_gen: v5e
topology: v5e:2x2
jax: 0.10.0
libtpu: 0.0.40
codegen_flags: <defaults>
</compile_context>

<pallas_src>
import math
import jax
import jax.numpy as jnp
from jax.experimental import pallas as pl
from jax.experimental.pallas import tpu as pltpu

_INV_LN10 = 1.0 / math.log(10.0)


def _round_up(x, m):
    return ((x + m - 1) // m) * m


def adv_g_loss_kernel(gt_ref, out_ref, mask_ref, w1_ref, b1_ref, w2_ref, b2_ref,
                      loss_ref, acc_ref):
    k = pl.program_id(0)

    @pl.when(k == 0)
    def _init():
        acc_ref[...] = jnp.zeros_like(acc_ref)

    # Elementwise mix on the VPU: gt + mask * (out - gt)  ==  mask*out + (1-mask)*gt
    gt = gt_ref[...]
    mixed = gt + mask_ref[...] * (out_ref[...] - gt)

    # Layer-1 partial matmul on the MXU (bf16 operands, f32 accumulation).
    acc_ref[...] += jnp.dot(mixed.astype(jnp.bfloat16), w1_ref[...],
                            preferred_element_type=jnp.float32)

    @pl.when(k == pl.num_programs(0) - 1)
    def _finalize():
        # Bias + LeakyReLU(0.2).  Padded hidden columns stay exactly 0.
        h = acc_ref[...] + b1_ref[...]
        h = jnp.where(h > 0, h, 0.2 * h)

        # Layer-2 as a lane-wise multiply + reduce (w2 stored as a (1, hidden) row).
        logits = jnp.sum(h * w2_ref[...], axis=-1, keepdims=True) + b2_ref[0, 0]

        # Stable log10(sigmoid(z)) = -softplus(-z)/ln(10) = (min(z,0) - log1p(e^{-|z|}))/ln(10)
        log10_dis = (jnp.minimum(logits, 0.0)
                     - jnp.log1p(jnp.exp(-jnp.abs(logits)))) * _INV_LN10

        # PyTorch loops batch_size times over the SAME mixed data, so the mean over the
        # stacked copies equals mean(log10(D(mixed))).
        inv_b = 1.0 / float(log10_dis.shape[0])
        loss_ref[0, 0] = jnp.sum(log10_dis) * inv_b


def adversarial_g_loss(ground_truth, net_output, mask, params, *, tk=512):
    """ground_truth / net_output / mask: (B, C, H, W).  Returns scalar loss."""
    B = ground_truth.shape[0]
    F = math.prod(ground_truth.shape[1:])
    w1, b1, w2, b2 = params
    hidden = w1.shape[1]

    # Pad hidden to a full 128-lane register; pad F to a multiple of the K tile.
    HID = _round_up(max(hidden, 128), 128)
    tk = min(tk, _round_up(F, 128))
    Fp = _round_up(F, tk)
    n_k = Fp // tk

    gt = ground_truth.reshape(B, F).astype(jnp.float32)
    out = net_output.reshape(B, F).astype(jnp.float32)
    msk = mask.reshape(B, F).astype(jnp.float32)
    if Fp != F:
        pad = ((0, 0), (0, Fp - F))
        gt, out, msk = jnp.pad(gt, pad), jnp.pad(out, pad), jnp.pad(msk, pad)

    # Zero-padded feature rows / hidden columns contribute exactly 0 through
    # leaky-ReLU and the zero-padded w2 row, so the result is unchanged.
    w1p = jnp.zeros((Fp, HID), jnp.bfloat16).at[:F, :hidden].set(w1.astype(jnp.bfloat16))
    b1p = jnp.zeros((1, HID), jnp.float32).at[:, :hidden].set(b1.astype(jnp.float32))
    w2p = jnp.zeros((1, HID), jnp.float32).at[:, :hidden].set(w2.astype(jnp.float32))
    b2p = b2.reshape(1, 1).astype(jnp.float32)

    cost = pl.CostEstimate(
        flops=2 * B * Fp * HID + 6 * B * Fp,
        transcendentals=2 * B,
        bytes_accessed=3 * B * Fp * 4 + Fp * HID * 2 + 2 * HID * 4 + 8,
    )

    grid_spec = pltpu.PrefetchScalarGridSpec(
        num_scalar_prefetch=0,
        grid=(n_k,),
        in_specs=[
            pl.BlockSpec((B, tk), lambda k: (0, k)),        # ground truth tile
            pl.BlockSpec((B, tk), lambda k: (0, k)),        # net output tile
            pl.BlockSpec((B, tk), lambda k: (0, k)),        # mask tile
            pl.BlockSpec((tk, HID), lambda k: (k, 0)),      # W1 tile (bf16)
            pl.BlockSpec((1, HID), lambda k: (0, 0)),       # b1 (resident)
            pl.BlockSpec((1, HID), lambda k: (0, 0)),       # w2 row (resident)
            pl.BlockSpec(memory_space=pltpu.MemorySpace.SMEM),  # b2 scalar
        ],
        out_specs=pl.BlockSpec(memory_space=pltpu.MemorySpace.SMEM),
        scratch_shapes=[pltpu.VMEM((B, HID), jnp.float32)],
    )

    loss = pl.pallas_call(
        adv_g_loss_kernel,
        out_shape=jax.ShapeDtypeStruct((1, 1), jnp.float32),
        grid_spec=grid_spec,
        compiler_params=pltpu.CompilerParams(
            dimension_semantics=("arbitrary",),
            vmem_limit_bytes=32 * 1024 * 1024,
        ),
        cost_estimate=cost,
    )(gt, out, msk, w1p, b1p, w2p, b2p)
    return loss[0, 0]


def init_discriminator_params(key, in_features, hidden):
    k1, k2 = jax.random.split(key)
    w1 = 0.02 * jax.random.normal(k1, (in_features, hidden), dtype=jnp.float32)
    b1 = jnp.zeros((1, hidden), dtype=jnp.float32)
    w2 = 0.02 * jax.random.normal(k2, (1, hidden), dtype=jnp.float32)  # stored as row
    b2 = jnp.zeros((1, 1), dtype=jnp.float32)
    return (w1, b1, w2, b2)


if __name__ == "__main__":
    # Small shapes consistent with the module: NCHW inputs.
    B, C, H, W = 2, 4, 16, 16
    hidden = 32

    key = jax.random.PRNGKey(0)
    k_gt, k_out, k_mask, k_params = jax.random.split(key, 4)

    ground_truth = jax.random.uniform(k_gt, (B, C, H, W), dtype=jnp.float32)
    net_output = jax.random.uniform(k_out, (B, C, H, W), dtype=jnp.float32)
    mask = jax.random.bernoulli(k_mask, 0.5, (B, C, H, W)).astype(jnp.float32)

    params = init_discriminator_params(k_params, C * H * W, hidden)

    loss = adversarial_g_loss(ground_truth, net_output, mask, params)
    jax.block_until_ready(loss)
    print("KERNEL_OK")
</pallas_src>

<mosaic_0001>
module attributes {stable_mosaic.version = 11 : i64} {
  func.func @adv_g_loss_kernel(%arg0: i32, %arg1: memref<2x512xf32, #tpu.memory_space<vmem>>, %arg2: memref<2x512xf32, #tpu.memory_space<vmem>>, %arg3: memref<2x512xf32, #tpu.memory_space<vmem>>, %arg4: memref<512x128xbf16, #tpu.memory_space<vmem>>, %arg5: memref<1x128xf32, #tpu.memory_space<vmem>>, %arg6: memref<1x128xf32, #tpu.memory_space<vmem>>, %arg7: memref<1x1xf32, #tpu.memory_space<smem>>, %arg8: memref<1x1xf32, #tpu.memory_space<smem>>, %arg9: memref<2x128xf32, #tpu.memory_space<vmem>>) attributes {dimension_semantics = [#tpu.dimension_semantics<arbitrary>], iteration_bounds = array<i64: 2>, scalar_prefetch = 0 : i64, scratch_operands = 1 : i64, tpu.core_type = #tpu.core_type<tc>, window_params = [{transform_indices = @transform_0, window_bounds = array<i64: 2, 512>}, {transform_indices = @transform_1, window_bounds = array<i64: 2, 512>}, {transform_indices = @transform_2, window_bounds = array<i64: 2, 512>}, {transform_indices = @transform_3, window_bounds = array<i64: 512, 128>}, {pipeline_mode = #tpu.pipeline_mode<synchronous>, transform_indices = @transform_4, window_bounds = array<i64: 1, 128>}, {pipeline_mode = #tpu.pipeline_mode<synchronous>, transform_indices = @transform_5, window_bounds = array<i64: 1, 128>}, {transform_indices = @transform_6, window_bounds = array<i64: 1, 1>}, {transform_indices = @transform_7, window_bounds = array<i64: 1, 1>}]} {
    %c0_i32 = arith.constant 0 : i32
    %0 = arith.cmpi eq, %arg0, %c0_i32 : i32
    %1 = arith.extui %0 : i1 to i32
    %c0_i32_0 = arith.constant 0 : i32
    %2 = arith.cmpi ne, %1, %c0_i32_0 : i32
    scf.if %2 {
      %cst_13 = arith.constant 0.000000e+00 : f32
      %18 = vector.broadcast %cst_13 : f32 to vector<2x128xf32>
      %c0_14 = arith.constant 0 : index
      %c0_15 = arith.constant 0 : index
      %19 = vector.load %arg9[%c0_14, %c0_15] : memref<2x128xf32, #tpu.memory_space<vmem>>, vector<2x128xf32>
      tpu.vector_store %arg9[%c0_14, %c0_15], %18 {strides = array<i32>} : memref<2x128xf32, #tpu.memory_space<vmem>>, vector<2x128xf32>,
    } else {
    }
    %c0 = arith.constant 0 : index
    %c0_1 = arith.constant 0 : index
    %3 = vector.load %arg1[%c0, %c0_1] : memref<2x512xf32, #tpu.memory_space<vmem>>, vector<2x512xf32>
    %c0_2 = arith.constant 0 : index
    %c0_3 = arith.constant 0 : index
    %4 = vector.load %arg3[%c0_2, %c0_3] : memref<2x512xf32, #tpu.memory_space<vmem>>, vector<2x512xf32>
    %c0_4 = arith.constant 0 : index
    %c0_5 = arith.constant 0 : index
    %5 = vector.load %arg2[%c0_4, %c0_5] : memref<2x512xf32, #tpu.memory_space<vmem>>, vector<2x512xf32>
    %6 = arith.subf %5, %3 : vector<2x512xf32>
    %7 = arith.mulf %4, %6 : vector<2x512xf32>
    %8 = arith.addf %3, %7 : vector<2x512xf32>
    %c0_6 = arith.constant 0 : index
    %c0_7 = arith.constant 0 : index
    %9 = vector.load %arg9[%c0_6, %c0_7] : memref<2x128xf32, #tpu.memory_space<vmem>>, vector<2x128xf32>
    %10 = arith.truncf %8 : vector<2x512xf32> to vector<2x512xbf16>
    %c0_8 = arith.constant 0 : index
    %c0_9 = arith.constant 0 : index
    %11 = vector.load %arg4[%c0_8, %c0_9] : memref<512x128xbf16, #tpu.memory_space<vmem>>, vector<512x128xbf16>
    %cst = arith.constant dense<0.000000e+00> : vector<2x128xf32>
    %12 = tpu.matmul %10, %11, %cst {dimension_numbers = #tpu.dot_dimension_numbers<[1], [0], [0], [1], [0, 0, 1, 1], [], []>} : vector<2x512xbf16>, vector<512x128xbf16>, vector<2x128xf32> -> vector<2x128xf32>
    %13 = arith.addf %9, %12 : vector<2x128xf32>
    %c0_10 = arith.constant 0 : index
    %c0_11 = arith.constant 0 : index
    %14 = vector.load %arg9[%c0_10, %c0_11] : memref<2x128xf32, #tpu.memory_space<vmem>>, vector<2x128xf32>
    tpu.vector_store %arg9[%c0_10, %c0_11], %13 {strides = array<i32>} : memref<2x128xf32, #tpu.memory_space<vmem>>, vector<2x128xf32>,
    %c1_i32 = arith.constant 1 : i32
    %15 = arith.cmpi eq, %arg0, %c1_i32 : i32
    %16 = arith.extui %15 : i1 to i32
    %c0_i32_12 = arith.constant 0 : i32
    %17 = arith.cmpi ne, %16, %c0_i32_12 : i32
    scf.if %17 {
      %c0_13 = arith.constant 0 : index
      %c0_14 = arith.constant 0 : index
      %18 = vector.load %arg9[%c0_13, %c0_14] : memref<2x128xf32, #tpu.memory_space<vmem>>, vector<2x128xf32>
      %c0_15 = arith.constant 0 : index
      %c0_16 = arith.constant 0 : index
      %19 = vector.load %arg5[%c0_15, %c0_16] : memref<1x128xf32, #tpu.memory_space<vmem>>, vector<1x128xf32>
      %20 = vector.broadcast %19 : vector<1x128xf32> to vector<2x128xf32>
      %21 = arith.addf %18, %20 : vector<2x128xf32>
      %cst_17 = arith.constant 0.000000e+00 : f32
      %22 = vector.broadcast %cst_17 : f32 to vector<2x128xf32>
      %23 = arith.cmpf ogt, %21, %22 : vector<2x128xf32>
      %cst_18 = arith.constant 2.000000e-01 : f32
      %24 = vector.broadcast %cst_18 : f32 to vector<2x128xf32>
      %25 = arith.mulf %24, %21 : vector<2x128xf32>
      %26 = arith.select %23, %21, %25 : vector<2x128xi1>, vector<2x128xf32>
      %c0_19 = arith.constant 0 : index
      %c0_20 = arith.constant 0 : index
      %27 = vector.load %arg6[%c0_19, %c0_20] : memref<1x128xf32, #tpu.memory_space<vmem>>, vector<1x128xf32>
      %28 = vector.broadcast %27 : vector<1x128xf32> to vector<2x128xf32>
      %29 = arith.mulf %26, %28 : vector<2x128xf32>
      %cst_21 = arith.constant dense<0.000000e+00> : vector<2xf32>
      %30 = vector.multi_reduction <add>, %29, %cst_21 [1] : vector<2x128xf32> to vector<2xf32>
      %31 = vector.shape_cast %30 : vector<2xf32> to vector<2x1xf32>
      %c0_22 = arith.constant 0 : index
      %c0_23 = arith.constant 0 : index
      %32 = memref.load %arg7[%c0_22, %c0_23] : memref<1x1xf32, #tpu.memory_space<smem>>
      %33 = vector.broadcast %32 : f32 to vector<2x1xf32>
      %34 = arith.addf %31, %33 : vector<2x1xf32>
      %cst_24 = arith.constant 0.000000e+00 : f32
      %35 = vector.broadcast %cst_24 : f32 to vector<2x1xf32>
      %36 = arith.minimumf %34, %35 : vector<2x1xf32>
      %37 = math.absf %34 : vector<2x1xf32>
      %cst_25 = arith.constant 0.000000e+00 : f32
      %38 = vector.broadcast %cst_25 : f32 to vector<2x1xf32>
      %39 = arith.subf %38, %37 : vector<2x1xf32>
      %40 = math.exp %39 : vector<2x1xf32>
      %41 = math.log1p %40 : vector<2x1xf32>
      %42 = arith.subf %36, %41 : vector<2x1xf32>
      %cst_26 = arith.constant 0.434294492 : f32
      %43 = vector.broadcast %cst_26 : f32 to vector<2x1xf32>
      %44 = arith.mulf %42, %43 : vector<2x1xf32>
      %45 = vector.shape_cast %44 : vector<2x1xf32> to vector<1x2x1xf32>
      %cst_27 = arith.constant dense<0.000000e+00> : vector<1xf32>
      %46 = vector.multi_reduction <add>, %45, %cst_27 [1, 2] : vector<1x2x1xf32> to vector<1xf32>
      %47 = vector.shape_cast %46 : vector<1xf32> to vector<1x1x1xf32>
      %48 = vector.extract %47[0, 0, 0] : f32 from vector<1x1x1xf32>
      %cst_28 = arith.constant 5.000000e-01 : f32
      %49 = arith.mulf %48, %cst_28 : f32
      %c0_29 = arith.constant 0 : index
      %c0_30 = arith.constant 0 : index
      %50 = memref.load %arg8[%c0_29, %c0_30] : memref<1x1xf32, #tpu.memory_space<smem>>
      memref.store %49, %arg8[%c0_29, %c0_30] : memref<1x1xf32, #tpu.memory_space<smem>>
    } else {
    }
    return
  }
  func.func @transform_0(%arg0: i32) -> (i32, i32) {
    %c0_i32 = arith.constant 0 : i32
    %c0_i32_0 = arith.constant 0 : i32
    return %c0_i32, %arg0 : i32, i32
  }
  func.func @transform_1(%arg0: i32) -> (i32, i32) {
    %c0_i32 = arith.constant 0 : i32
    %c0_i32_0 = arith.constant 0 : i32
    return %c0_i32, %arg0 : i32, i32
  }
  func.func @transform_2(%arg0: i32) -> (i32, i32) {
    %c0_i32 = arith.constant 0 : i32
    %c0_i32_0 = arith.constant 0 : i32
    return %c0_i32, %arg0 : i32, i32
  }
  func.func @transform_3(%arg0: i32) -> (i32, i32) {
    %c0_i32 = arith.constant 0 : i32
    %c0_i32_0 = arith.constant 0 : i32
    return %arg0, %c0_i32 : i32, i32
  }
  func.func @transform_4(%arg0: i32) -> (i32, i32) {
    %c0_i32 = arith.constant 0 : i32
    %c0_i32_0 = arith.constant 0 : i32
    %c0_i32_1 = arith.constant 0 : i32
    return %c0_i32, %c0_i32_0 : i32, i32
  }
  func.func @transform_5(%arg0: i32) -> (i32, i32) {
    %c0_i32 = arith.constant 0 : i32
    %c0_i32_0 = arith.constant 0 : i32
    %c0_i32_1 = arith.constant 0 : i32
    return %c0_i32, %c0_i32_0 : i32, i32
  }
  func.func @transform_6(%arg0: i32) -> (i32, i32) {
    %c0_i32 = arith.constant 0 : i32
    %c0_i32_0 = arith.constant 0 : i32
    %c0_i32_1 = arith.constant 0 : i32
    return %c0_i32, %c0_i32_0 : i32, i32
  }
  func.func @transform_7(%arg0: i32) -> (i32, i32) {
    %c0_i32 = arith.constant 0 : i32
    %c0_i32_0 = arith.constant 0 : i32
    %c0_i32_1 = arith.constant 0 : i32
    return %c0_i32, %c0_i32_0 : i32, i32
  }
}

</mosaic_0001>

<llo_original>
// kernel: tpu_custom_call.1
$region0: #{tpu_custom_call.1}
  #allocation0 [shape = 'u32[]', space=smem, size = 0x4, offset = 0x4, fixed_abs, tag = 'smem constant byte address 0x4 - core index']
  #allocation1 [shape = 'u32[72,128]{1,0:T(1,128)}', space=vmem, size = 0x9000, scoped, tag = 'internal scratch']
  #allocation2 [shape = 'f32[2,128]{1,0:T(2,128)}', space=vmem, size = 0x400, scoped, tag = 'scratch operand']
  #allocation3 [shape = 'f32[1,1]{1,0:T(1,128)S(6)}', space=smem, size = 0x200, scoped, tag = 'scoped memory for tpu_custom_call.1']
  %s0 = inlined_call_operand.hbm [shape: f32[2,1024], index: 0, kind: input, shape index: {}]
  %s1 = inlined_call_operand.hbm [shape: f32[2,1024], index: 1, kind: input, shape index: {}]
  %s2 = inlined_call_operand.hbm [shape: f32[2,1024], index: 2, kind: input, shape index: {}]
  %s3 = inlined_call_operand.hbm [shape: bf16[1024,128], index: 3, kind: input, shape index: {}]
  %s4 = inlined_call_operand.vmem [shape: f32[1,128], index: 4, kind: input, shape index: {}]
  %s5 = inlined_call_operand.vmem [shape: f32[1,128], index: 5, kind: input, shape index: {}]
  %s6 = inlined_call_operand.<no memory space> [shape: f32[1,1], index: 6, kind: input, shape index: {}]
  %s7 = inlined_call_operand.hbm [shape: f32[1,1], index: 7, kind: output, shape index: {}]
  %s8 = sld [smem:[#allocation0]]
  $region85: #{tpu_custom_call.1} parent=0
    _
  %s10 = ssub.s32 1, %s8
  %s11 = scalar_select 0, %s10, %s8
  %12 = sst [smem:[#allocation3]] %s6
  $region1: #{tpu_custom_call.1} parent=0
    #allocation4 [shape = 'u8[8192]{0}', space=vmem, size = 0x2000, scoped, tag = 'input window, operand 0']
    #allocation5 [shape = 's32[2]{0}', space=sflag, size = 0x8, scoped, tag = 'scoped memory for tpu_custom_call.1']
    #allocation6 [shape = 's32[2]{0}', space=sflag, size = 0x8, scoped, tag = 'scoped memory for tpu_custom_call.1']
    #allocation7 [shape = 'u8[8192]{0}', space=vmem, size = 0x2000, scoped, tag = 'input window, operand 1']
    #allocation8 [shape = 's32[2]{0}', space=sflag, size = 0x8, scoped, tag = 'scoped memory for tpu_custom_call.1']
    #allocation9 [shape = 'u8[8192]{0}', space=vmem, size = 0x2000, scoped, tag = 'input window, operand 2']
    #allocation10 [shape = 'u8[262144]{0}', space=vmem, size = 0x40000, scoped, tag = 'input window, operand 3']
    #allocation11 [shape = 's32[2]{0}', space=sflag, size = 0x8, scoped, tag = 'scoped memory for tpu_custom_call.1']
    #allocation12 [shape = 'u8[512]{0}', space=smem, size = 0x200, scoped, tag = 'output window, operand 0, single buffered']
    %13 = vsyncpa [#allocation5], 0
    %s14 = scalar_lea.sflag [#allocation5], 1
    %15 = vsyncpa %s14, 0
    %16 = vsyncpa [#allocation8], 0
    %s17 = scalar_lea.sflag [#allocation8], 1
    %18 = vsyncpa %s17, 0
    %19 = vsyncpa [#allocation11], 0
    %s20 = scalar_lea.sflag [#allocation11], 1
    %21 = vsyncpa %s20, 0
    %22 = vsyncpa [#allocation6], 0
    loop: start=0, step=1, limit=4
    $region2: #{tpu_custom_call.1} parent=1 // loop_pre_header
      _
    $region3: #{tpu_custom_call.1} parent=1 // loop_header
      %s24 = sphi 0, %s28
      %p25 = scmp.ge.s32.totalorder %s24, 4
      %s34 = sphi 0, %s36
      %s37 = sphi 0, %s34
      %s38 = sphi 0, %s37
      %s54 = sphi 0, %s38
      %s60 = sphi 0, %s62
      %s63 = sphi 0, %s60
      %s64 = sphi 0, %s63
      %s80 = sphi 0, %s64
      %s86 = sphi 0, %s88
      %s89 = sphi 0, %s86
      %s90 = sphi 0, %s89
      %s106 = sphi 0, %s90
      %s112 = sphi 0, %s114
      %s115 = sphi 0, %s112
      %s116 = sphi 0, %s115
      %s132 = sphi 0, %s116
      %s136 = sphi 0, %s136
      %s138 = sphi 0, %s136
      %s139 = sphi 0, %s138
      %s153 = sphi 0, %s139
      %s157 = sphi 0, %s157
      %s159 = sphi 0, %s157
      %s160 = sphi 0, %s159
      %s174 = sphi 0, %s160
      %s178 = sphi 0, %s178
      %s180 = sphi 0, %s178
      %s181 = sphi 0, %s180
      %s195 = sphi 0, %s181
      %s199 = sphi 0, %s199
      %s201 = sphi 0, %s199
      %s202 = sphi 0, %s201
      %s216 = sphi 0, %s202
    $region4: #{tpu_custom_call.1} parent=1 // loop_header_branch
      %27 = sbr.rel (%p25) target = $region8
    $region5: #{tpu_custom_call.1} parent=1 // loop_body
      %s29 = ssub.s32 %s24, 1
      %s30 = ssub.s32 %s24, 2
      %s31 = sadd.s32 %s24, 1
      %s32 = ssub.s32 %s24, %s31
      %p33 = scmp.eq.s32.totalorder %s32, 0
      %s35 = sadd.s32 %s34, 1
      %s36 = scalar_select %p33, %s34, %s35
      %p39 = pneg %p33
      %p40 = scmp.eq.s32.totalorder %s24, 1
      %p41 = por %p39, %p40
      %p42 = scmp.ne.s32.totalorder %s34, %s37
      %p43 = scmp.eq.s32.totalorder %s24, 0
      %p44 = por %p42, %p43
      %p45 = scmp.ne.s32.totalorder %s34, %s37
      %p46 = scmp.eq.s32.totalorder %s29, 1
      %p47 = por %p45, %p46
      %p48 = scmp.ne.s32.totalorder %s37, %s38
      %p49 = scmp.eq.s32.totalorder %s29, 0
      %p50 = por %p48, %p49
      %p51 = scmp.ne.s32.totalorder %s37, %s38
      %p52 = scmp.eq.s32.totalorder %s30, 1
      %p53 = por %p51, %p52
      %p55 = scmp.ne.s32.totalorder %s38, %s54
      %p56 = scmp.eq.s32.totalorder %s30, 0
      %p57 = por %p55, %p56
      %s58 = ssub.s32 %s24, %s31
      %p59 = scmp.eq.s32.totalorder %s58, 0
      %s61 = sadd.s32 %s60, 1
      %s62 = scalar_select %p59, %s60, %s61
      %p65 = pneg %p59
      %p66 = scmp.eq.s32.totalorder %s24, 1
      %p67 = por %p65, %p66
      %p68 = scmp.ne.s32.totalorder %s60, %s63
      %p69 = scmp.eq.s32.totalorder %s24, 0
      %p70 = por %p68, %p69
      %p71 = scmp.ne.s32.totalorder %s60, %s63
      %p72 = scmp.eq.s32.totalorder %s29, 1
      %p73 = por %p71, %p72
      %p74 = scmp.ne.s32.totalorder %s63, %s64
      %p75 = scmp.eq.s32.totalorder %s29, 0
      %p76 = por %p74, %p75
      %p77 = scmp.ne.s32.totalorder %s63, %s64
      %p78 = scmp.eq.s32.totalorder %s30, 1
      %p79 = por %p77, %p78
      %p81 = scmp.ne.s32.totalorder %s64, %s80
      %p82 = scmp.eq.s32.totalorder %s30, 0
      %p83 = por %p81, %p82
      %s84 = ssub.s32 %s24, %s31
      %p85 = scmp.eq.s32.totalorder %s84, 0
      %s87 = sadd.s32 %s86, 1
      %s88 = scalar_select %p85, %s86, %s87
      %p91 = pneg %p85
      %p92 = scmp.eq.s32.totalorder %s24, 1
      %p93 = por %p91, %p92
      %p94 = scmp.ne.s32.totalorder %s86, %s89
      %p95 = scmp.eq.s32.totalorder %s24, 0
      %p96 = por %p94, %p95
      %p97 = scmp.ne.s32.totalorder %s86, %s89
      %p98 = scmp.eq.s32.totalorder %s29, 1
      %p99 = por %p97, %p98
      %p100 = scmp.ne.s32.totalorder %s89, %s90
      %p101 = scmp.eq.s32.totalorder %s29, 0
      %p102 = por %p100, %p101
      %p103 = scmp.ne.s32.totalorder %s89, %s90
      %p104 = scmp.eq.s32.totalorder %s30, 1
      %p105 = por %p103, %p104
      %p107 = scmp.ne.s32.totalorder %s90, %s106
      %p108 = scmp.eq.s32.totalorder %s30, 0
      %p109 = por %p107, %p108
      %s110 = ssub.s32 %s24, %s31
      %p111 = scmp.eq.s32.totalorder %s110, 0
      %s113 = sadd.s32 %s112, 1
      %s114 = scalar_select %p111, %s112, %s113
      %p117 = pneg %p111
      %p118 = scmp.eq.s32.totalorder %s24, 1
      %p119 = por %p117, %p118
      %p120 = scmp.ne.s32.totalorder %s112, %s115
      %p121 = scmp.eq.s32.totalorder %s24, 0
      %p122 = por %p120, %p121
      %p123 = scmp.ne.s32.totalorder %s112, %s115
      %p124 = scmp.eq.s32.totalorder %s29, 1
      %p125 = por %p123, %p124
      %p126 = scmp.ne.s32.totalorder %s115, %s116
      %p127 = scmp.eq.s32.totalorder %s29, 0
      %p128 = por %p126, %p127
      %p129 = scmp.ne.s32.totalorder %s115, %s116
      %p130 = scmp.eq.s32.totalorder %s30, 1
      %p131 = por %p129, %p130
      %p133 = scmp.ne.s32.totalorder %s116, %s132
      %p134 = scmp.eq.s32.totalorder %s30, 0
      %p135 = por %p133, %p134
      %s137 = sadd.s32 %s136, 1
      %p140 = scmp.eq.s32.totalorder %s24, 1
      %p141 = scmp.ne.s32.totalorder %s136, %s138
      %p142 = scmp.eq.s32.totalorder %s24, 0
      %p143 = por %p141, %p142
      %p144 = scmp.ne.s32.totalorder %s136, %s138
      %p145 = scmp.eq.s32.totalorder %s29, 1
      %p146 = por %p144, %p145
      %p147 = scmp.ne.s32.totalorder %s138, %s139
      %p148 = scmp.eq.s32.totalorder %s29, 0
      %p149 = por %p147, %p148
      %p150 = scmp.ne.s32.totalorder %s138, %s139
      %p151 = scmp.eq.s32.totalorder %s30, 1
      %p152 = por %p150, %p151
      %p154 = scmp.ne.s32.totalorder %s139, %s153
      %p155 = scmp.eq.s32.totalorder %s30, 0
      %p156 = por %p154, %p155
      %s158 = sadd.s32 %s157, 1
      %p161 = scmp.eq.s32.totalorder %s24, 1
      %p162 = scmp.ne.s32.totalorder %s157, %s159
      %p163 = scmp.eq.s32.totalorder %s24, 0
      %p164 = por %p162, %p163
      %p165 = scmp.ne.s32.totalorder %s157, %s159
      %p166 = scmp.eq.s32.totalorder %s29, 1
      %p167 = por %p165, %p166
      %p168 = scmp.ne.s32.totalorder %s159, %s160
      %p169 = scmp.eq.s32.totalorder %s29, 0
      %p170 = por %p168, %p169
      %p171 = scmp.ne.s32.totalorder %s159, %s160
      %p172 = scmp.eq.s32.totalorder %s30, 1
      %p173 = por %p171, %p172
      %p175 = scmp.ne.s32.totalorder %s160, %s174
      %p176 = scmp.eq.s32.totalorder %s30, 0
      %p177 = por %p175, %p176
      %s179 = sadd.s32 %s178, 1
      %p182 = scmp.eq.s32.totalorder %s24, 1
      %p183 = scmp.ne.s32.totalorder %s178, %s180
      %p184 = scmp.eq.s32.totalorder %s24, 0
      %p185 = por %p183, %p184
      %p186 = scmp.ne.s32.totalorder %s178, %s180
      %p187 = scmp.eq.s32.totalorder %s29, 1
      %p188 = por %p186, %p187
      %p189 = scmp.ne.s32.totalorder %s180, %s181
      %p190 = scmp.eq.s32.totalorder %s29, 0
      %p191 = por %p189, %p190
      %p192 = scmp.ne.s32.totalorder %s180, %s181
      %p193 = scmp.eq.s32.totalorder %s30, 1
      %p194 = por %p192, %p193
      %p196 = scmp.ne.s32.totalorder %s181, %s195
      %p197 = scmp.eq.s32.totalorder %s30, 0
      %p198 = por %p196, %p197
      %s200 = sadd.s32 %s199, 1
      %p203 = scmp.eq.s32.totalorder %s24, 1
      %p204 = scmp.ne.s32.totalorder %s199, %s201
      %p205 = scmp.eq.s32.totalorder %s24, 0
      %p206 = por %p204, %p205
      %p207 = scmp.ne.s32.totalorder %s199, %s201
      %p208 = scmp.eq.s32.totalorder %s29, 1
      %p209 = por %p207, %p208
      %p210 = scmp.ne.s32.totalorder %s201, %s202
      %p211 = scmp.eq.s32.totalorder %s29, 0
      %p212 = por %p210, %p211
      %p213 = scmp.ne.s32.totalorder %s201, %s202
      %p214 = scmp.eq.s32.totalorder %s30, 1
      %p215 = por %p213, %p214
      %p217 = scmp.ne.s32.totalorder %s202, %s216
      %p218 = scmp.eq.s32.totalorder %s30, 0
      %p219 = por %p217, %p218
      %p220 = scmp.le.s32.totalorder 1, %s24
      %p221 = scmp.lt.s32.totalorder %s24, 3
      %p222 = pnand %p220, %p221
      %p223 = pneg %p222
      // Predicated region
      $region9: #{tpu_custom_call.1} parent=5 // pred_check
        _
      $region10: #{tpu_custom_call.1} parent=5 // pred_check_branch
        %225 = sbr.rel (%p222) target = $region12
      $region11: #{tpu_custom_call.1} parent=5 // pred_region
        %s226 = ssub.s32 %s24, 1
        // Predicated region
        $region13: #{tpu_custom_call.1} parent=11 // pred_check
          %p227 = pneg %p149
        $region14: #{tpu_custom_call.1} parent=11 // pred_check_branch
          %229 = sbr.rel (%p227) target = $region16
        $region15: #{tpu_custom_call.1} parent=11 // pred_region
          _
        $region16: #{tpu_custom_call.1} parent=11 // pred_fallthru
          _
        // Predicated region
        $region17: #{tpu_custom_call.1} parent=11 // pred_check
          %p230 = pneg %p170
        $region18: #{tpu_custom_call.1} parent=11 // pred_check_branch
          %232 = sbr.rel (%p230) target = $region20
        $region19: #{tpu_custom_call.1} parent=11 // pred_region
          _
        $region20: #{tpu_custom_call.1} parent=11 // pred_fallthru
          _
        // Predicated region
        $region21: #{tpu_custom_call.1} parent=11 // pred_check
          %p233 = pneg %p191
        $region22: #{tpu_custom_call.1} parent=11 // pred_check_branch
          %235 = sbr.rel (%p233) target = $region24
        $region23: #{tpu_custom_call.1} parent=11 // pred_region
          _
        $region24: #{tpu_custom_call.1} parent=11 // pred_fallthru
          _
      $region12: #{tpu_custom_call.1} parent=5 // pred_fallthru
        _
      %p236 = scmp.lt.s32.totalorder %s24, 2
      // Predicated region
      $region25: #{tpu_custom_call.1} parent=5 // pred_check
        %p237 = pneg %p236
      $region26: #{tpu_custom_call.1} parent=5 // pred_check_branch
        %239 = sbr.rel (%p237) target = $region28
      $region27: #{tpu_custom_call.1} parent=5 // pred_region
        // Predicated region
        $region29: #{tpu_custom_call.1} parent=27 // pred_check
          %p240 = pneg %p44
        $region30: #{tpu_custom_call.1} parent=27 // pred_check_branch
          %242 = sbr.rel (%p240) target = $region32
        $region31: #{tpu_custom_call.1} parent=27 // pred_region
          %s243 = sand.u32 %s34, 1
          %s244 = scalar_lea.sflag [#allocation5], %s243
          %s245 = sand.u32 %s34, 1
          %s246 = smul.addr %s245, 8
          %s247 = scalar_lea.vmem [#allocation4], %s246
          %s248 = smul.u32 4, %s24
          %250 = vsyncadd %s244, 0
          %s251 = smul.addr %s248, 2
          %s252 = scalar_lea.hbm %s0, %s251
          %s254 = sshll.u32 %s252, 4
          %s255 = int_to_ptr.hbm [resolvable:$true] %s254
          %s256 = sshll.u32 %s247, 4
          %s257 = int_to_ptr.vmem [resolvable:$true] %s256
          %259 = dma.hbm_to_vmem [thread:$0]  %s255, 128, %s257, %s244
        $region32: #{tpu_custom_call.1} parent=27 // pred_fallthru
          _
        // Predicated region
        $region33: #{tpu_custom_call.1} parent=27 // pred_check
          %p260 = pneg %p70
        $region34: #{tpu_custom_call.1} parent=27 // pred_check_branch
          %262 = sbr.rel (%p260) target = $region36
        $region35: #{tpu_custom_call.1} parent=27 // pred_region
          %s263 = sand.u32 %s24, 1
          %s264 = scalar_lea.sflag [#allocation8], %s263
          %s265 = sand.u32 %s60, 1
          %s266 = smul.addr %s265, 8
          %s267 = scalar_lea.vmem [#allocation7], %s266
          %s268 = smul.u32 4, %s24
          %270 = vsyncadd %s264, 0
          %s271 = smul.addr %s268, 2
          %s272 = scalar_lea.hbm %s1, %s271
          %s274 = sshll.u32 %s272, 4
          %s275 = int_to_ptr.hbm [resolvable:$true] %s274
          %s276 = sshll.u32 %s267, 4
          %s277 = int_to_ptr.vmem [resolvable:$true] %s276
          %279 = dma.hbm_to_vmem [thread:$0]  %s275, 128, %s277, %s264
        $region36: #{tpu_custom_call.1} parent=27 // pred_fallthru
          _
        // Predicated region
        $region37: #{tpu_custom_call.1} parent=27 // pred_check
          %p280 = pneg %p96
        $region38: #{tpu_custom_call.1} parent=27 // pred_check_branch
          %282 = sbr.rel (%p280) target = $region40
        $region39: #{tpu_custom_call.1} parent=27 // pred_region
          %s283 = sand.u32 %s24, 1
          %s284 = scalar_lea.sflag [#allocation8], %s283
          %s285 = sand.u32 %s86, 1
          %s286 = smul.addr %s285, 8
          %s287 = scalar_lea.vmem [#allocation9], %s286
          %s288 = smul.u32 4, %s24
          %290 = vsyncadd %s284, 0
          %s291 = smul.addr %s288, 2
          %s292 = scalar_lea.hbm %s2, %s291
          %s294 = sshll.u32 %s292, 4
          %s295 = int_to_ptr.hbm [resolvable:$true] %s294
          %s296 = sshll.u32 %s287, 4
          %s297 = int_to_ptr.vmem [resolvable:$true] %s296
          %299 = dma.hbm_to_vmem [thread:$0]  %s295, 128, %s297, %s284
        $region40: #{tpu_custom_call.1} parent=27 // pred_fallthru
          _
        // Predicated region
        $region41: #{tpu_custom_call.1} parent=27 // pred_check
          %p300 = pneg %p122
        $region42: #{tpu_custom_call.1} parent=27 // pred_check_branch
          %302 = sbr.rel (%p300) target = $region44
        $region43: #{tpu_custom_call.1} parent=27 // pred_region
          %s303 = sand.u32 %s112, 1
          %s304 = scalar_lea.sflag [#allocation11], %s303
          %s305 = sand.u32 %s112, 1
          %s306 = smul.addr %s305, 256
          %s307 = scalar_lea.vmem [#allocation10], %s306
          %s308 = smul.u32 64, %s24
          %310 = vsyncadd %s304, 0
          %s311 = smul.addr %s308, 4
          %s312 = scalar_lea.hbm %s3, %s311
          %s313 = sshll.u32 %s312, 4
          %s314 = int_to_ptr.hbm [resolvable:$true] %s313
          %s315 = sshll.u32 %s307, 4
          %s316 = int_to_ptr.vmem [resolvable:$true] %s315
          %321 = dma.hbm_to_vmem [thread:$0]  %s314, 4096, %s316, %s304, 64, 64, 4
        $region44: #{tpu_custom_call.1} parent=27 // pred_fallthru
          _
      $region28: #{tpu_custom_call.1} parent=5 // pred_fallthru
        _
      %p322 = scmp.le.s32.totalorder 1, %s24
      %p323 = scmp.lt.s32.totalorder %s24, 3
      %p324 = pnand %p322, %p323
      %p325 = pneg %p324
      // Predicated region
      $region45: #{tpu_custom_call.1} parent=5 // pred_check
        _
      $region46: #{tpu_custom_call.1} parent=5 // pred_check_branch
        %327 = sbr.rel (%p324) target = $region48
      $region47: #{tpu_custom_call.1} parent=5 // pred_region
        %s328 = ssub.s32 %s24, 1
        %s329 = sand.u32 %s37, 1
        %s330 = scalar_lea.sflag [#allocation5], %s329
        %s331 = sand.u32 %s37, 1
        %s332 = smul.addr %s331, 8
        %s333 = scalar_lea.vmem [#allocation4], %s332
        // Predicated region
        $region49: #{tpu_custom_call.1} parent=47 // pred_check
          %p334 = pneg %p50
        $region50: #{tpu_custom_call.1} parent=47 // pred_check_branch
          %336 = sbr.rel (%p334) target = $region52
        $region51: #{tpu_custom_call.1} parent=47 // pred_region
          %338 = dma.done %s330, 128
        $region52: #{tpu_custom_call.1} parent=47 // pred_fallthru
          _
        %s339 = sand.u32 %s29, 1
        %s340 = scalar_lea.sflag [#allocation8], %s339
        %s341 = sand.u32 %s63, 1
        %s342 = smul.addr %s341, 8
        %s343 = scalar_lea.vmem [#allocation7], %s342
        // Predicated region
        $region53: #{tpu_custom_call.1} parent=47 // pred_check
          %p344 = pneg %p76
        $region54: #{tpu_custom_call.1} parent=47 // pred_check_branch
          %346 = sbr.rel (%p344) target = $region56
        $region55: #{tpu_custom_call.1} parent=47 // pred_region
          %348 = dma.done %s340, 128
        $region56: #{tpu_custom_call.1} parent=47 // pred_fallthru
          _
        %s349 = sand.u32 %s29, 1
        %s350 = scalar_lea.sflag [#allocation8], %s349
        %s351 = sand.u32 %s89, 1
        %s352 = smul.addr %s351, 8
        %s353 = scalar_lea.vmem [#allocation9], %s352
        // Predicated region
        $region57: #{tpu_custom_call.1} parent=47 // pred_check
          %p354 = pneg %p102
        $region58: #{tpu_custom_call.1} parent=47 // pred_check_branch
          %356 = sbr.rel (%p354) target = $region60
        $region59: #{tpu_custom_call.1} parent=47 // pred_region
          %358 = dma.done %s350, 128
        $region60: #{tpu_custom_call.1} parent=47 // pred_fallthru
          _
        %s359 = sand.u32 %s115, 1
        %s360 = scalar_lea.sflag [#allocation11], %s359
        %s361 = sand.u32 %s115, 1
        %s362 = smul.addr %s361, 256
        %s363 = scalar_lea.vmem [#allocation10], %s362
        // Predicated region
        $region61: #{tpu_custom_call.1} parent=47 // pred_check
          %p364 = pneg %p128
        $region62: #{tpu_custom_call.1} parent=47 // pred_check_branch
          %366 = sbr.rel (%p364) target = $region64
        $region63: #{tpu_custom_call.1} parent=47 // pred_region
          %368 = dma.done %s360, 4096
        $region64: #{tpu_custom_call.1} parent=47 // pred_fallthru
          _
        %s369 = sand.u32 %s37, 1
        %s370 = scalar_lea.sflag [#allocation5], %s369
        %s371 = sand.u32 %s37, 1
        %s372 = smul.addr %s371, 8
        %s373 = scalar_lea.vmem [#allocation4], %s372
        %p374 = pneg %p50
        %p375 = pneg %p47
        %s376 = sand.u32 %s29, 1
        %s377 = scalar_lea.sflag [#allocation8], %s376
        %s378 = sand.u32 %s63, 1
        %s379 = smul.addr %s378, 8
        %s380 = scalar_lea.vmem [#allocation7], %s379
        %p381 = pneg %p76
        %p382 = pneg %p73
        %s383 = sand.u32 %s29, 1
        %s384 = scalar_lea.sflag [#allocation8], %s383
        %s385 = sand.u32 %s89, 1
        %s386 = smul.addr %s385, 8
        %s387 = scalar_lea.vmem [#allocation9], %s386
        %p388 = pneg %p102
        %p389 = pneg %p99
        %s390 = sand.u32 %s115, 1
        %s391 = scalar_lea.sflag [#allocation11], %s390
        %s392 = sand.u32 %s115, 1
        %s393 = smul.addr %s392, 256
        %s394 = scalar_lea.vmem [#allocation10], %s393
        %p395 = pneg %p128
        %p396 = pneg %p125
        %p397 = pneg %p149
        %p398 = pneg %p146
        %p399 = pneg %p170
        %p400 = pneg %p167
        %p401 = pneg %p191
        %p402 = pneg %p188
        %p403 = pneg %p212
        %p404 = pneg %p209
        %s405 = smul.u32 4, %s29
        %s406 = smul.u32 4, %s29
        %s407 = smul.u32 4, %s29
        %s408 = smul.u32 64, %s29
        %p409 = scmp.eq.s32.totalorder %s29, 0
        // Predicated region
        $region65: #{tpu_custom_call.1} parent=47 // pred_check
          %p410 = pneg %p409
        $region66: #{tpu_custom_call.1} parent=47 // pred_check_branch
          %412 = sbr.rel (%p410) target = $region68
        $region67: #{tpu_custom_call.1} parent=47 // pred_region
          %413 = vst [vmem:[#allocation2] sm:$0x3] 0.0
        $region68: #{tpu_custom_call.1} parent=47 // pred_fallthru
          _
        %v414 = vld [vmem:[%s333] sm:$0xff]
        %v415 = vld [vmem:[%s353] sm:$0xff]
        %v416 = vld [vmem:[%s343] sm:$0xff]
        %v417 = vsub.f32 %v416, %v414
        %v418 = vmul.f32 %v415, %v417
        %v419 = vadd.f32 %v414, %v418
        %v420 = vld [vmem:[#allocation2] sm:$0x3]
        %422 = vst [vmem:[#allocation1] ss:$4 sm:$0xff] %v419
        %v423 = vld.sshfl [vmem:[#allocation1] sm:$0xff pattern:$0x73625140]
        %v424 = vld.sshfl [vmem:[#allocation1 + $0x8] sm:$0xff pattern:$0x73625140]
        %v425 = vld.sshfl [vmem:[#allocation1 + $0x10] sm:$0xff pattern:$0x73625140]
        %v426 = vld.sshfl [vmem:[#allocation1 + $0x18] sm:$0xff pattern:$0x73625140]
        %v431 = vpack.c.bf16 %v423, %v423
        %v432 = vpack.c.bf16 %v424, %v424
        %v433 = vpack.c.bf16 %v425, %v425
        %v434 = vpack.c.bf16 %v426, %v426
        %v435 = vld [vmem:[%s363] sm:$0xf]
        %v436 = vld [vmem:[%s363 + $0x4] sm:$0xf]
        %v437 = vld [vmem:[%s363 + $0x8] sm:$0xf]
        %v438 = vld [vmem:[%s363 + $0xc] sm:$0xf]
        %v439 = vld [vmem:[%s363 + $0x10] sm:$0xf]
        %v440 = vld [vmem:[%s363 + $0x14] sm:$0xf]
        %v441 = vld [vmem:[%s363 + $0x18] sm:$0xf]
        %v442 = vld [vmem:[%s363 + $0x1c] sm:$0xf]
        %v443 = vld [vmem:[%s363 + $0x20] sm:$0xf]
        %v444 = vld [vmem:[%s363 + $0x24] sm:$0xf]
        %v445 = vld [vmem:[%s363 + $0x28] sm:$0xf]
        %v446 = vld [vmem:[%s363 + $0x2c] sm:$0xf]
        %v447 = vld [vmem:[%s363 + $0x30] sm:$0xf]
        %v448 = vld [vmem:[%s363 + $0x34] sm:$0xf]
        %v449 = vld [vmem:[%s363 + $0x38] sm:$0xf]
        %v450 = vld [vmem:[%s363 + $0x3c] sm:$0xf]
        %v451 = vld [vmem:[%s363 + $0x40] sm:$0xf]
        %v452 = vld [vmem:[%s363 + $0x44] sm:$0xf]
        %v453 = vld [vmem:[%s363 + $0x48] sm:$0xf]
        %v454 = vld [vmem:[%s363 + $0x4c] sm:$0xf]
        %v455 = vld [vmem:[%s363 + $0x50] sm:$0xf]
        %v456 = vld [vmem:[%s363 + $0x54] sm:$0xf]
        %v457 = vld [vmem:[%s363 + $0x58] sm:$0xf]
        %v458 = vld [vmem:[%s363 + $0x5c] sm:$0xf]
        %v459 = vld [vmem:[%s363 + $0x60] sm:$0xf]
        %v460 = vld [vmem:[%s363 + $0x64] sm:$0xf]
        %v461 = vld [vmem:[%s363 + $0x68] sm:$0xf]
        %v462 = vld [vmem:[%s363 + $0x6c] sm:$0xf]
        %v463 = vld [vmem:[%s363 + $0x70] sm:$0xf]
        %v464 = vld [vmem:[%s363 + $0x74] sm:$0xf]
        %v465 = vld [vmem:[%s363 + $0x78] sm:$0xf]
        %v466 = vld [vmem:[%s363 + $0x7c] sm:$0xf]
        %v467 = vld [vmem:[%s363 + $0x80] sm:$0xf]
        %v468 = vld [vmem:[%s363 + $0x84] sm:$0xf]
        %v469 = vld [vmem:[%s363 + $0x88] sm:$0xf]
        %v470 = vld [vmem:[%s363 + $0x8c] sm:$0xf]
        %v471 = vld [vmem:[%s363 + $0x90] sm:$0xf]
        %v472 = vld [vmem:[%s363 + $0x94] sm:$0xf]
        %v473 = vld [vmem:[%s363 + $0x98] sm:$0xf]
        %v474 = vld [vmem:[%s363 + $0x9c] sm:$0xf]
        %v475 = vld [vmem:[%s363 + $0xa0] sm:$0xf]
        %v476 = vld [vmem:[%s363 + $0xa4] sm:$0xf]
        %v477 = vld [vmem:[%s363 + $0xa8] sm:$0xf]
        %v478 = vld [vmem:[%s363 + $0xac] sm:$0xf]
        %v479 = vld [vmem:[%s363 + $0xb0] sm:$0xf]
        %v480 = vld [vmem:[%s363 + $0xb4] sm:$0xf]
        %v481 = vld [vmem:[%s363 + $0xb8] sm:$0xf]
        %v482 = vld [vmem:[%s363 + $0xbc] sm:$0xf]
        %v483 = vld [vmem:[%s363 + $0xc0] sm:$0xf]
        %v484 = vld [vmem:[%s363 + $0xc4] sm:$0xf]
        %v485 = vld [vmem:[%s363 + $0xc8] sm:$0xf]
        %v486 = vld [vmem:[%s363 + $0xcc] sm:$0xf]
        %v487 = vld [vmem:[%s363 + $0xd0] sm:$0xf]
        %v488 = vld [vmem:[%s363 + $0xd4] sm:$0xf]
        %v489 = vld [vmem:[%s363 + $0xd8] sm:$0xf]
        %v490 = vld [vmem:[%s363 + $0xdc] sm:$0xf]
        %v491 = vld [vmem:[%s363 + $0xe0] sm:$0xf]
        %v492 = vld [vmem:[%s363 + $0xe4] sm:$0xf]
        %v493 = vld [vmem:[%s363 + $0xe8] sm:$0xf]
        %v494 = vld [vmem:[%s363 + $0xec] sm:$0xf]
        %v495 = vld [vmem:[%s363 + $0xf0] sm:$0xf]
        %v496 = vld [vmem:[%s363 + $0xf4] sm:$0xf]
        %v497 = vld [vmem:[%s363 + $0xf8] sm:$0xf]
        %v498 = vld [vmem:[%s363 + $0xfc] sm:$0xf]
        %v563 = vunpack.c.l.b16 %v435
        %v564 = vunpack.c.l.b16 %v436
        %v565 = vunpack.c.l.b16 %v437
        %v566 = vunpack.c.l.b16 %v438
        %v567 = vunpack.c.l.b16 %v439
        %v568 = vunpack.c.l.b16 %v440
        %v569 = vunpack.c.l.b16 %v441
        %v570 = vunpack.c.l.b16 %v442
        %v571 = vunpack.c.l.b16 %v443
        %v572 = vunpack.c.l.b16 %v444
        %v573 = vunpack.c.l.b16 %v445
        %v574 = vunpack.c.l.b16 %v446
        %v575 = vunpack.c.l.b16 %v447
        %v576 = vunpack.c.l.b16 %v448
        %v577 = vunpack.c.l.b16 %v449
        %v578 = vunpack.c.l.b16 %v450
        %v579 = vunpack.c.l.b16 %v451
        %v580 = vunpack.c.l.b16 %v452
        %v581 = vunpack.c.l.b16 %v453
        %v582 = vunpack.c.l.b16 %v454
        %v583 = vunpack.c.l.b16 %v455
        %v584 = vunpack.c.l.b16 %v456
        %v585 = vunpack.c.l.b16 %v457
        %v586 = vunpack.c.l.b16 %v458
        %v587 = vunpack.c.l.b16 %v459
        %v588 = vunpack.c.l.b16 %v460
        %v589 = vunpack.c.l.b16 %v461
        %v590 = vunpack.c.l.b16 %v462
        %v591 = vunpack.c.l.b16 %v463
        %v592 = vunpack.c.l.b16 %v464
        %v593 = vunpack.c.l.b16 %v465
        %v594 = vunpack.c.l.b16 %v466
        %v595 = vunpack.c.l.b16 %v467
        %v596 = vunpack.c.l.b16 %v468
        %v597 = vunpack.c.l.b16 %v469
        %v598 = vunpack.c.l.b16 %v470
        %v599 = vunpack.c.l.b16 %v471
        %v600 = vunpack.c.l.b16 %v472
        %v601 = vunpack.c.l.b16 %v473
        %v602 = vunpack.c.l.b16 %v474
        %v603 = vunpack.c.l.b16 %v475
        %v604 = vunpack.c.l.b16 %v476
        %v605 = vunpack.c.l.b16 %v477
        %v606 = vunpack.c.l.b16 %v478
        %v607 = vunpack.c.l.b16 %v479
        %v608 = vunpack.c.l.b16 %v480
        %v609 = vunpack.c.l.b16 %v481
        %v610 = vunpack.c.l.b16 %v482
        %v611 = vunpack.c.l.b16 %v483
        %v612 = vunpack.c.l.b16 %v484
        %v613 = vunpack.c.l.b16 %v485
        %v614 = vunpack.c.l.b16 %v486
        %v615 = vunpack.c.l.b16 %v487
        %v616 = vunpack.c.l.b16 %v488
        %v617 = vunpack.c.l.b16 %v489
        %v618 = vunpack.c.l.b16 %v490
        %v619 = vunpack.c.l.b16 %v491
        %v620 = vunpack.c.l.b16 %v492
        %v621 = vunpack.c.l.b16 %v493
        %v622 = vunpack.c.l.b16 %v494
        %v623 = vunpack.c.l.b16 %v495
        %v624 = vunpack.c.l.b16 %v496
        %v625 = vunpack.c.l.b16 %v497
        %v626 = vunpack.c.l.b16 %v498
        %v627 = vpack.c.b16 %v564, %v563
        %v628 = vpack.c.b16 %v566, %v565
        %v629 = vpack.c.b16 %v568, %v567
        %v630 = vpack.c.b16 %v570, %v569
        %v631 = vpack.c.b16 %v572, %v571
        %v632 = vpack.c.b16 %v574, %v573
        %v633 = vpack.c.b16 %v576, %v575
        %v634 = vpack.c.b16 %v578, %v577
        %v635 = vpack.c.b16 %v580, %v579
        %v636 = vpack.c.b16 %v582, %v581
        %v637 = vpack.c.b16 %v584, %v583
        %v638 = vpack.c.b16 %v586, %v585
        %v639 = vpack.c.b16 %v588, %v587
        %v640 = vpack.c.b16 %v590, %v589
        %v641 = vpack.c.b16 %v592, %v591
        %v642 = vpack.c.b16 %v594, %v593
        %v643 = vpack.c.b16 %v596, %v595
        %v644 = vpack.c.b16 %v598, %v597
        %v645 = vpack.c.b16 %v600, %v599
        %v646 = vpack.c.b16 %v602, %v601
        %v647 = vpack.c.b16 %v604, %v603
        %v648 = vpack.c.b16 %v606, %v605
        %v649 = vpack.c.b16 %v608, %v607
        %v650 = vpack.c.b16 %v610, %v609
        %v651 = vpack.c.b16 %v612, %v611
        %v652 = vpack.c.b16 %v614, %v613
        %v653 = vpack.c.b16 %v616, %v615
        %v654 = vpack.c.b16 %v618, %v617
        %v655 = vpack.c.b16 %v620, %v619
        %v656 = vpack.c.b16 %v622, %v621
        %v657 = vpack.c.b16 %v624, %v623
        %v658 = vpack.c.b16 %v626, %v625
        %691 = vmatpush.bf16.msra.mxu0 %v634
        %692 = vmatpush.bf16.msra.mxu0 %v633
        %693 = vmatpush.bf16.msra.mxu0 %v632
        %694 = vmatpush.bf16.msra.mxu0 %v631
        %695 = vmatpush.bf16.msra.mxu0 %v630
        %696 = vmatpush.bf16.msra.mxu0 %v629
        %697 = vmatpush.bf16.msra.mxu0 %v628
        %698 = vmatpush.bf16.msra.mxu0 %v627
        %699 = vmatmul.bf16.gmra.mxu0 %v431
        %v700 = vpop.f32.mrf.mxu0
        %v701 = vadd.f32 0.0, %v700
        %v702 = vpop.f32.mrf.mxu0
        %703 = vdwg.mxu0
        %704 = vmatpush.bf16.msra.mxu0 %v642
        %705 = vmatpush.bf16.msra.mxu0 %v641
        %706 = vmatpush.bf16.msra.mxu0 %v640
        %707 = vmatpush.bf16.msra.mxu0 %v639
        %708 = vmatpush.bf16.msra.mxu0 %v638
        %709 = vmatpush.bf16.msra.mxu0 %v637
        %710 = vmatpush.bf16.msra.mxu0 %v636
        %711 = vmatpush.bf16.msra.mxu0 %v635
        %712 = vmatmul.bf16.gmra.mxu0 %v432
        %v713 = vpop.f32.mrf.mxu0
        %v714 = vadd.f32 %v701, %v713
        %v715 = vpop.f32.mrf.mxu0
        %716 = vdwg.mxu0
        %717 = vmatpush.bf16.msra.mxu0 %v650
        %718 = vmatpush.bf16.msra.mxu0 %v649
        %719 = vmatpush.bf16.msra.mxu0 %v648
        %720 = vmatpush.bf16.msra.mxu0 %v647
        %721 = vmatpush.bf16.msra.mxu0 %v646
        %722 = vmatpush.bf16.msra.mxu0 %v645
        %723 = vmatpush.bf16.msra.mxu0 %v644
        %724 = vmatpush.bf16.msra.mxu0 %v643
        %725 = vmatmul.bf16.gmra.mxu0 %v433
        %v726 = vpop.f32.mrf.mxu0
        %v727 = vadd.f32 %v714, %v726
        %v728 = vpop.f32.mrf.mxu0
        %729 = vdwg.mxu0
        %730 = vmatpush.bf16.msra.mxu0 %v658
        %731 = vmatpush.bf16.msra.mxu0 %v657
        %732 = vmatpush.bf16.msra.mxu0 %v656
        %733 = vmatpush.bf16.msra.mxu0 %v655
        %734 = vmatpush.bf16.msra.mxu0 %v654
        %735 = vmatpush.bf16.msra.mxu0 %v653
        %736 = vmatpush.bf16.msra.mxu0 %v652
        %737 = vmatpush.bf16.msra.mxu0 %v651
        %738 = vmatmul.bf16.gmra.mxu0 %v434
        %v739 = vpop.f32.mrf.mxu0
        %v740 = vadd.f32 %v727, %v739
        %v741 = vpop.f32.mrf.mxu0
        %742 = vdwg.mxu0
        %v743 = vadd.f32 %v420, %v740
        %744 = vst [vmem:[#allocation2] sm:$0x3] %v743
        %p745 = scmp.eq.s32.totalorder %s29, 1
        // Predicated region
        $region69: #{tpu_custom_call.1} parent=47 // pred_check
          %p746 = pneg %p745
        $region70: #{tpu_custom_call.1} parent=47 // pred_check_branch
          %748 = sbr.rel (%p746) target = $region72
        $region71: #{tpu_custom_call.1} parent=47 // pred_region
          %v749 = vld [vmem:[#allocation2] sm:$0x3]
          %v750 = vld [vmem:[%s4] sm:$0x1]
          %v752 = vperm.slane %v750, 0
          %v754 = vadd.f32 %v749, %v752
          %vm755 = vcmp.gt.f32.partialorder %v754, 0.0
          %v756 = vmul.f32 %v754, 0.2
          %v757 = vsel %vm755, %v754, %v756
          %v758 = vld [vmem:[%s5] sm:$0x1]
          %v760 = vperm.slane %v758, 0
          %v762 = vmul.f32 %v757, %v760
          %vm763 = vcmask 1041408
          %v764 = vsel %vm763, %v762, 0.0
          %765 = vadd.xlane.f32.xlu0 %v764
          %v766 = vpop.xlane.xlu0 %765
          %s767 = sld [smem:[#allocation3]]
          %v768 = vstv %s767
          %v769 = vadd.f32 %v766, %v768
          %v770 = vmin.f32 %v769, 0.0
          %v771 = vand.u32 2147483647, %v769
          %v772 = vsub.f32 0.0, %v771
          %v773 = vmul.f32 %v772, 1.442695
          %v774 = vpow.pop %v773
          %v775 = vadd.f32 %v774, 1.0
          %v776 = vlog2.pop %v775
          %v777 = vmul.f32 %v776, 0.6931472
          %v778 = vmul.f32 -0.5, %v774
          %v779 = vadd.f32 %v778, 1.0
          %v780 = vmul.f32 %v779, %v774
          %v781 = vand.u32 2147483647, %v774
          %vm782 = vcmp.lt.f32.partialorder %v781, 0.0004427343
          %v783 = vsel %vm782, %v780, %v777
          %v784 = vsub.f32 %v770, %v783
          %v785 = vmul.f32 %v784, 0.4342945
          %vm786 = vcmask 1024
          %v787 = vsel %vm786, %v785, 0.0
          %788 = vadd.xlane.f32.xlu0 %v787
          %v789 = vpop.xlane.xlu0 %788
          %v790 = vrot.slane %v789, 4
          %v791 = vadd.f32 %v789, %v790
          %v792 = vrot.slane %v791, 2
          %v793 = vadd.f32 %v791, %v792
          %v794 = vrot.slane %v793, 1
          %v795 = vadd.f32 %v793, %v794
          %s796 = vtos %v795
          %s797 = smul.f32 %s796, 0.5
          %s798 = scalar_lea.smem [#allocation12], 0
          %799 = sst [smem:[%s798]] %s797
        $region72: #{tpu_custom_call.1} parent=47 // pred_fallthru
          _
        // Predicated region
        $region73: #{tpu_custom_call.1} parent=47 // pred_check
          %p800 = pneg %p209
        $region74: #{tpu_custom_call.1} parent=47 // pred_check_branch
          %802 = sbr.rel (%p800) target = $region76
        $region75: #{tpu_custom_call.1} parent=47 // pred_region
          %804 = vsyncadd [#allocation6], 0
          %s806 = sshll.u32 %s7, 4
          %s807 = int_to_ptr.hbm [resolvable:$true] %s806
          %809 = dma.smem_to_hbm [#allocation12], 16, %s807, [#allocation6]
        $region76: #{tpu_custom_call.1} parent=47 // pred_fallthru
          _
        // Predicated region
        $region77: #{tpu_custom_call.1} parent=47 // pred_check
          %p810 = pneg %p209
        $region78: #{tpu_custom_call.1} parent=47 // pred_check_branch
          %812 = sbr.rel (%p810) target = $region80
        $region79: #{tpu_custom_call.1} parent=47 // pred_region
          %814 = dma.done [#allocation6], 16
        $region80: #{tpu_custom_call.1} parent=47 // pred_fallthru
          _
        %815 = sfence
      $region48: #{tpu_custom_call.1} parent=5 // pred_fallthru
        _
      %p816 = scmp.le.s32.totalorder 2, %s24
      // Predicated region
      $region81: #{tpu_custom_call.1} parent=5 // pred_check
        %p817 = pneg %p816
      $region82: #{tpu_custom_call.1} parent=5 // pred_check_branch
        %819 = sbr.rel (%p817) target = $region84
      $region83: #{tpu_custom_call.1} parent=5 // pred_region
        %s820 = ssub.s32 %s24, 2
      $region84: #{tpu_custom_call.1} parent=5 // pred_fallthru
        _
    $region6: #{tpu_custom_call.1} parent=1 // loop_footer
      %s28 = sadd.s32 1, %s24
    $region7: #{tpu_custom_call.1} parent=1 // loop_footer_branch
      %23 = sbr.rel target = $region3
    $region8: #{tpu_custom_call.1} parent=1 // loop_exit
      _
    %821 = vsyncpa [#allocation5], 1
    %s822 = scalar_lea.sflag [#allocation5], 1
    %823 = vsyncpa %s822, 1
    %824 = vsyncpa [#allocation8], 1
    %s825 = scalar_lea.sflag [#allocation8], 1
    %826 = vsyncpa %s825, 1
    %827 = vsyncpa [#allocation11], 1
    %s828 = scalar_lea.sflag [#allocation11], 1
    %829 = vsyncpa %s828, 1
    %830 = vsyncpa [#allocation6], 1
    %s831 = scalar_lea.sflag [#allocation6], 1
    %832 = vsyncpa %s831, 1

</llo_original>
